<compile_context>
chip_gen: v6e
topology: v6e:2x2x1
jax: 0.10.0
libtpu: 0.0.40
codegen_flags: <defaults>
</compile_context>

<pallas_src>
import functools

import jax
import jax.numpy as jnp
from jax.experimental import pallas as pl
from jax.experimental.pallas import tpu as pltpu

NEG_SLOPE = 0.01  # torch.nn.LeakyReLU default


def _round_up(n, m):
    return (n + m - 1) // m * m


def _mlp_kernel(n_layers, matmul_dtype, x_ref, *refs):
    """Fused feature-major MLP.

    x_ref : (D+1, TB)   concat(x, t) tile, batch on the lane axis.
    refs  : (w0, b0, w1, b1, ..., out_ref)
            w_i : (out_i, in_i)  torch-layout weight (used directly: h = W @ y)
            b_i : (out_i, 1)     f32 bias (lane-broadcast add)
    """
    o_ref = refs[-1]
    y = x_ref[...].astype(jnp.float32)                       # (in_0, TB)
    for i in range(n_layers):
        w = refs[2 * i][...]                                  # (out_i, in_i)
        b = refs[2 * i + 1][...]                              # (out_i, 1) f32
        h = jnp.dot(w, y.astype(matmul_dtype),
                    preferred_element_type=jnp.float32)       # (out_i, TB) f32
        h = h + b                                             # bias, lane-dense
        # LeakyReLU after every layer (reference's loop guard is always true).
        y = jnp.where(h > 0, h, NEG_SLOPE * h)
    o_ref[...] = y.astype(o_ref.dtype)


def mlp_forward(x, t, weights, biases, *, batch_tile=4096,
                matmul_dtype=jnp.float32):
    """x: (B, D); t: scalar or (B,); weights[i]: torch-style (out_i, in_i) with
    in_0 == D + 1; biases[i]: (out_i,).  Returns (B, out_last) float32.

    matmul_dtype: jnp.float32 (default, use on v5e) or jnp.bfloat16 (v6e/v7x).
    """
    x = jnp.asarray(x, jnp.float32)
    B, D = x.shape
    n_layers = len(weights)
    assert int(weights[0].shape[1]) == D + 1, "layer 0 must take concat(x, t)"
    out_dim = int(weights[-1].shape[0])

    # torch: scalar t broadcasts to (B,)
    t = jnp.asarray(t, jnp.float32)
    if t.ndim == 0:
        t = jnp.full((B,), t, dtype=jnp.float32)
    xt = jnp.concatenate([x, t[:, None]], axis=-1)            # (B, D+1)

    # Batch tile: multiple of 128 (batch sits on the lane axis), large default.
    TB = min(_round_up(B, 128), _round_up(int(batch_tile), 128))
    # v7x megacore: give the "parallel" batch grid >= 2 steps when B allows.
    if _round_up(B, TB) // TB < 2 and B > 128:
        TB = max(128, _round_up((B + 1) // 2, 128))
    B_pad = _round_up(B, TB)
    if B_pad != B:
        xt = jnp.pad(xt, ((0, B_pad - B), (0, 0)))
    xt_t = xt.T                                               # (D+1, B_pad)

    # Per-layer params as individual VMEM-resident inputs (constant index_map
    # -> DMA'd once, no in-kernel slicing).  Weights pre-cast on the host to
    # the matmul operand dtype; biases stay f32.
    params, param_specs = [], []
    for w, b in zip(weights, biases):
        w = jnp.asarray(w, jnp.float32).astype(matmul_dtype)  # (out_i, in_i)
        b = jnp.asarray(b, jnp.float32).reshape(-1, 1)        # (out_i, 1)
        params += [w, b]
        param_specs += [pl.BlockSpec(w.shape, lambda i: (0, 0)),
                        pl.BlockSpec(b.shape, lambda i: (0, 0))]

    grid = (B_pad // TB,)
    kernel = functools.partial(_mlp_kernel, n_layers, matmul_dtype)

    flops = 2 * B_pad * sum(int(w.shape[0]) * int(w.shape[1]) for w in weights)
    param_bytes = sum(int(p.size) * p.dtype.itemsize for p in params)
    bytes_accessed = 4 * (int(xt_t.size) + B_pad * out_dim) + param_bytes

    out = pl.pallas_call(
        kernel,
        out_shape=jax.ShapeDtypeStruct((out_dim, B_pad), jnp.float32),
        grid=grid,
        in_specs=[pl.BlockSpec((D + 1, TB), lambda i: (0, i))] + param_specs,
        out_specs=pl.BlockSpec((out_dim, TB), lambda i: (0, i)),
        compiler_params=pltpu.CompilerParams(
            dimension_semantics=("parallel",)),
        cost_estimate=pl.CostEstimate(flops=flops, transcendentals=0,
                                      bytes_accessed=bytes_accessed),
    )(xt_t, *params)

    out = out.T                                               # (B_pad, out_dim)
    return out[:B] if B_pad != B else out


def _reference(x, t, weights, biases):
    B = x.shape[0]
    t = jnp.asarray(t, jnp.float32)
    if t.ndim == 0:
        t = jnp.ones((B,), jnp.float32) * t
    y = jnp.concatenate([x, t[:, None]], axis=-1)
    for w, b in zip(weights, biases):
        y = y @ w.T + b
        y = jnp.where(y > 0, y, NEG_SLOPE * y)
    return y


if __name__ == "__main__":
    # config.model.layers = [5, 32, 32, 2]  (first dim = x_dim + 1 time channel)
    layers = [5, 32, 32, 2]
    batch = 8
    x_dim = layers[0] - 1

    key = jax.random.PRNGKey(0)
    key, kx, kt = jax.random.split(key, 3)
    x = jax.random.normal(kx, (batch, x_dim), dtype=jnp.float32)
    t = jax.random.uniform(kt, (batch,), dtype=jnp.float32)

    weights, biases = [], []
    for in_ch, out_ch in zip(layers, layers[1:]):
        key, kw, kb = jax.random.split(key, 3)
        bound = 1.0 / (in_ch ** 0.5)
        weights.append(jax.random.uniform(kw, (out_ch, in_ch), jnp.float32,
                                          minval=-bound, maxval=bound))
        biases.append(jax.random.uniform(kb, (out_ch,), jnp.float32,
                                         minval=-bound, maxval=bound))

    # Vector-t path (f32 matmul operands -- the v5e-safe default).
    out = jax.block_until_ready(mlp_forward(x, t, weights, biases))
    ref = _reference(x, t, weights, biases)
    assert out.shape == (batch, layers[-1]), out.shape
    assert jnp.allclose(out, ref, atol=1e-4, rtol=1e-4), "mismatch vs reference"

    # Scalar-t path (torch broadcasts scalar t to (B,)).
    out_s = jax.block_until_ready(
        mlp_forward(x, jnp.float32(0.5), weights, biases))
    ref_s = _reference(x, jnp.float32(0.5), weights, biases)
    assert jnp.allclose(out_s, ref_s, atol=1e-4, rtol=1e-4), "scalar-t mismatch"

    # bf16 matmul-operand path (v6e/v7x perf option) -- looser tolerance.
    out_bf = jax.block_until_ready(
        mlp_forward(x, t, weights, biases, matmul_dtype=jnp.bfloat16))
    assert jnp.allclose(out_bf, ref, atol=5e-2, rtol=5e-2), "bf16 path mismatch"

    print("KERNEL_OK")
</pallas_src>

<mosaic_0001>
module attributes {stable_mosaic.version = 11 : i64} {
  func.func @_mlp_kernel(%arg0: i32, %arg1: memref<5x128xf32, #tpu.memory_space<vmem>>, %arg2: memref<32x5xf32, #tpu.memory_space<vmem>>, %arg3: memref<32x1xf32, #tpu.memory_space<vmem>>, %arg4: memref<32x32xf32, #tpu.memory_space<vmem>>, %arg5: memref<32x1xf32, #tpu.memory_space<vmem>>, %arg6: memref<2x32xf32, #tpu.memory_space<vmem>>, %arg7: memref<2x1xf32, #tpu.memory_space<vmem>>, %arg8: memref<2x128xf32, #tpu.memory_space<vmem>>) attributes {dimension_semantics = [#tpu.dimension_semantics<parallel>], iteration_bounds = array<i64: 1>, scalar_prefetch = 0 : i64, scratch_operands = 0 : i64, tpu.core_type = #tpu.core_type<tc>, window_params = [{transform_indices = @transform_0, window_bounds = array<i64: 5, 128>}, {pipeline_mode = #tpu.pipeline_mode<synchronous>, transform_indices = @transform_1, window_bounds = array<i64: 32, 5>}, {pipeline_mode = #tpu.pipeline_mode<synchronous>, transform_indices = @transform_2, window_bounds = array<i64: 32, 1>}, {pipeline_mode = #tpu.pipeline_mode<synchronous>, transform_indices = @transform_3, window_bounds = array<i64: 32, 32>}, {pipeline_mode = #tpu.pipeline_mode<synchronous>, transform_indices = @transform_4, window_bounds = array<i64: 32, 1>}, {pipeline_mode = #tpu.pipeline_mode<synchronous>, transform_indices = @transform_5, window_bounds = array<i64: 2, 32>}, {pipeline_mode = #tpu.pipeline_mode<synchronous>, transform_indices = @transform_6, window_bounds = array<i64: 2, 1>}, {transform_indices = @transform_7, window_bounds = array<i64: 2, 128>}]} {
    %c0 = arith.constant 0 : index
    %c0_0 = arith.constant 0 : index
    %0 = vector.load %arg1[%c0, %c0_0] : memref<5x128xf32, #tpu.memory_space<vmem>>, vector<5x128xf32>
    %c0_1 = arith.constant 0 : index
    %c0_2 = arith.constant 0 : index
    %1 = vector.load %arg2[%c0_1, %c0_2] : memref<32x5xf32, #tpu.memory_space<vmem>>, vector<32x5xf32>
    %c0_3 = arith.constant 0 : index
    %c0_4 = arith.constant 0 : index
    %2 = vector.load %arg3[%c0_3, %c0_4] : memref<32x1xf32, #tpu.memory_space<vmem>>, vector<32x1xf32>
    %cst = arith.constant dense<0.000000e+00> : vector<32x128xf32>
    %3 = tpu.matmul %1, %0, %cst {dimension_numbers = #tpu.dot_dimension_numbers<[1], [0], [0], [1], [0, 0, 1, 1], [], []>} : vector<32x5xf32>, vector<5x128xf32>, vector<32x128xf32> -> vector<32x128xf32>
    %4 = vector.broadcast %2 : vector<32x1xf32> to vector<32x128xf32>
    %5 = arith.addf %3, %4 : vector<32x128xf32>
    %cst_5 = arith.constant 0.000000e+00 : f32
    %6 = vector.broadcast %cst_5 : f32 to vector<32x128xf32>
    %7 = arith.cmpf ogt, %5, %6 : vector<32x128xf32>
    %cst_6 = arith.constant 0.00999999977 : f32
    %8 = vector.broadcast %cst_6 : f32 to vector<32x128xf32>
    %9 = arith.mulf %8, %5 : vector<32x128xf32>
    %10 = arith.select %7, %5, %9 : vector<32x128xi1>, vector<32x128xf32>
    %c0_7 = arith.constant 0 : index
    %c0_8 = arith.constant 0 : index
    %11 = vector.load %arg4[%c0_7, %c0_8] : memref<32x32xf32, #tpu.memory_space<vmem>>, vector<32x32xf32>
    %c0_9 = arith.constant 0 : index
    %c0_10 = arith.constant 0 : index
    %12 = vector.load %arg5[%c0_9, %c0_10] : memref<32x1xf32, #tpu.memory_space<vmem>>, vector<32x1xf32>
    %cst_11 = arith.constant dense<0.000000e+00> : vector<32x128xf32>
    %13 = tpu.matmul %11, %10, %cst_11 {dimension_numbers = #tpu.dot_dimension_numbers<[1], [0], [0], [1], [0, 0, 1, 1], [], []>} : vector<32x32xf32>, vector<32x128xf32>, vector<32x128xf32> -> vector<32x128xf32>
    %14 = vector.broadcast %12 : vector<32x1xf32> to vector<32x128xf32>
    %15 = arith.addf %13, %14 : vector<32x128xf32>
    %cst_12 = arith.constant 0.000000e+00 : f32
    %16 = vector.broadcast %cst_12 : f32 to vector<32x128xf32>
    %17 = arith.cmpf ogt, %15, %16 : vector<32x128xf32>
    %cst_13 = arith.constant 0.00999999977 : f32
    %18 = vector.broadcast %cst_13 : f32 to vector<32x128xf32>
    %19 = arith.mulf %18, %15 : vector<32x128xf32>
    %20 = arith.select %17, %15, %19 : vector<32x128xi1>, vector<32x128xf32>
    %c0_14 = arith.constant 0 : index
    %c0_15 = arith.constant 0 : index
    %21 = vector.load %arg6[%c0_14, %c0_15] : memref<2x32xf32, #tpu.memory_space<vmem>>, vector<2x32xf32>
    %c0_16 = arith.constant 0 : index
    %c0_17 = arith.constant 0 : index
    %22 = vector.load %arg7[%c0_16, %c0_17] : memref<2x1xf32, #tpu.memory_space<vmem>>, vector<2x1xf32>
    %cst_18 = arith.constant dense<0.000000e+00> : vector<2x128xf32>
    %23 = tpu.matmul %21, %20, %cst_18 {dimension_numbers = #tpu.dot_dimension_numbers<[1], [0], [0], [1], [0, 0, 1, 1], [], []>} : vector<2x32xf32>, vector<32x128xf32>, vector<2x128xf32> -> vector<2x128xf32>
    %24 = vector.broadcast %22 : vector<2x1xf32> to vector<2x128xf32>
    %25 = arith.addf %23, %24 : vector<2x128xf32>
    %cst_19 = arith.constant 0.000000e+00 : f32
    %26 = vector.broadcast %cst_19 : f32 to vector<2x128xf32>
    %27 = arith.cmpf ogt, %25, %26 : vector<2x128xf32>
    %cst_20 = arith.constant 0.00999999977 : f32
    %28 = vector.broadcast %cst_20 : f32 to vector<2x128xf32>
    %29 = arith.mulf %28, %25 : vector<2x128xf32>
    %30 = arith.select %27, %25, %29 : vector<2x128xi1>, vector<2x128xf32>
    %c0_21 = arith.constant 0 : index
    %c0_22 = arith.constant 0 : index
    %31 = vector.load %arg8[%c0_21, %c0_22] : memref<2x128xf32, #tpu.memory_space<vmem>>, vector<2x128xf32>
    tpu.vector_store %arg8[%c0_21, %c0_22], %30 {strides = array<i32>} : memref<2x128xf32, #tpu.memory_space<vmem>>, vector<2x128xf32>,
    return
  }
  func.func @transform_0(%arg0: i32) -> (i32, i32) {
    %c0_i32 = arith.constant 0 : i32
    %c0_i32_0 = arith.constant 0 : i32
    return %c0_i32, %arg0 : i32, i32
  }
  func.func @transform_1(%arg0: i32) -> (i32, i32) {
    %c0_i32 = arith.constant 0 : i32
    %c0_i32_0 = arith.constant 0 : i32
    %c0_i32_1 = arith.constant 0 : i32
    return %c0_i32, %c0_i32_0 : i32, i32
  }
  func.func @transform_2(%arg0: i32) -> (i32, i32) {
    %c0_i32 = arith.constant 0 : i32
    %c0_i32_0 = arith.constant 0 : i32
    %c0_i32_1 = arith.constant 0 : i32
    return %c0_i32, %c0_i32_0 : i32, i32
  }
  func.func @transform_3(%arg0: i32) -> (i32, i32) {
    %c0_i32 = arith.constant 0 : i32
    %c0_i32_0 = arith.constant 0 : i32
    %c0_i32_1 = arith.constant 0 : i32
    return %c0_i32, %c0_i32_0 : i32, i32
  }
  func.func @transform_4(%arg0: i32) -> (i32, i32) {
    %c0_i32 = arith.constant 0 : i32
    %c0_i32_0 = arith.constant 0 : i32
    %c0_i32_1 = arith.constant 0 : i32
    return %c0_i32, %c0_i32_0 : i32, i32
  }
  func.func @transform_5(%arg0: i32) -> (i32, i32) {
    %c0_i32 = arith.constant 0 : i32
    %c0_i32_0 = arith.constant 0 : i32
    %c0_i32_1 = arith.constant 0 : i32
    return %c0_i32, %c0_i32_0 : i32, i32
  }
  func.func @transform_6(%arg0: i32) -> (i32, i32) {
    %c0_i32 = arith.constant 0 : i32
    %c0_i32_0 = arith.constant 0 : i32
    %c0_i32_1 = arith.constant 0 : i32
    return %c0_i32, %c0_i32_0 : i32, i32
  }
  func.func @transform_7(%arg0: i32) -> (i32, i32) {
    %c0_i32 = arith.constant 0 : i32
    %c0_i32_0 = arith.constant 0 : i32
    return %c0_i32, %arg0 : i32, i32
  }
}

</mosaic_0001>

<llo_original>
// kernel: tpu_custom_call.1
$region0: #{tpu_custom_call.1}
  #allocation0 [shape = 'u32[]', space=smem, size = 0x4, offset = 0x4, fixed_abs, tag = 'smem constant byte address 0x4 - core index']
  #allocation1 [shape = 'u32[144,128]{1,0:T(1,128)}', space=vmem, size = 0x12000, scoped, tag = 'internal scratch']
  %s0 = inlined_call_operand.vmem [shape: f32[5,128], index: 0, kind: input, shape index: {}]
  %s1 = inlined_call_operand.vmem [shape: f32[32,5], index: 1, kind: input, shape index: {}]
  %s2 = inlined_call_operand.vmem [shape: f32[32,1], index: 2, kind: input, shape index: {}]
  %s3 = inlined_call_operand.vmem [shape: f32[32,32], index: 3, kind: input, shape index: {}]
  %s4 = inlined_call_operand.vmem [shape: f32[32,1], index: 4, kind: input, shape index: {}]
  %s5 = inlined_call_operand.vmem [shape: f32[2,32], index: 5, kind: input, shape index: {}]
  %s6 = inlined_call_operand.vmem [shape: f32[2,1], index: 6, kind: input, shape index: {}]
  %s7 = inlined_call_operand.hbm [shape: f32[2,128], index: 7, kind: output, shape index: {}]
  %s8 = sld [smem:[#allocation0]]
  $region38: #{tpu_custom_call.1} parent=0
    _
  %s10 = ssub.s32 1, %s8
  %s11 = scalar_select 0, %s10, %s8
  $region1: #{tpu_custom_call.1} parent=0
    #allocation2 [shape = 'u8[1024]{0}', space=vmem, size = 0x400, scoped, tag = 'output window, operand 0, single buffered']
    #allocation3 [shape = 's32[1]{0}', space=sflag, size = 0x4, scoped, tag = 'scoped memory for tpu_custom_call.1']
    %12 = vsyncpa [#allocation3], 0
    // Predicated region
    $region2: #{tpu_custom_call.1} parent=1 // pred_check
      _
    $region3: #{tpu_custom_call.1} parent=1 // pred_check_branch
      %14 = sbr.rel (0) target = $region5
    $region4: #{tpu_custom_call.1} parent=1 // pred_region
      _
    $region5: #{tpu_custom_call.1} parent=1 // pred_fallthru
      _
    // Predicated region
    $region6: #{tpu_custom_call.1} parent=1 // pred_check
      _
    $region7: #{tpu_custom_call.1} parent=1 // pred_check_branch
      %16 = sbr.rel (0) target = $region9
    $region8: #{tpu_custom_call.1} parent=1 // pred_region
      _
    $region9: #{tpu_custom_call.1} parent=1 // pred_fallthru
      _
    // Predicated region
    $region10: #{tpu_custom_call.1} parent=1 // pred_check
      _
    $region11: #{tpu_custom_call.1} parent=1 // pred_check_branch
      %18 = sbr.rel (0) target = $region13
    $region12: #{tpu_custom_call.1} parent=1 // pred_region
      _
    $region13: #{tpu_custom_call.1} parent=1 // pred_fallthru
      _
    // Predicated region
    $region14: #{tpu_custom_call.1} parent=1 // pred_check
      _
    $region15: #{tpu_custom_call.1} parent=1 // pred_check_branch
      %20 = sbr.rel (0) target = $region17
    $region16: #{tpu_custom_call.1} parent=1 // pred_region
      _
    $region17: #{tpu_custom_call.1} parent=1 // pred_fallthru
      _
    // Predicated region
    $region18: #{tpu_custom_call.1} parent=1 // pred_check
      _
    $region19: #{tpu_custom_call.1} parent=1 // pred_check_branch
      %22 = sbr.rel (0) target = $region21
    $region20: #{tpu_custom_call.1} parent=1 // pred_region
      _
    $region21: #{tpu_custom_call.1} parent=1 // pred_fallthru
      _
    // Predicated region
    $region22: #{tpu_custom_call.1} parent=1 // pred_check
      _
    $region23: #{tpu_custom_call.1} parent=1 // pred_check_branch
      %24 = sbr.rel (0) target = $region25
    $region24: #{tpu_custom_call.1} parent=1 // pred_region
      _
    $region25: #{tpu_custom_call.1} parent=1 // pred_fallthru
      _
    // Predicated region
    $region26: #{tpu_custom_call.1} parent=1 // pred_check
      _
    $region27: #{tpu_custom_call.1} parent=1 // pred_check_branch
      %26 = sbr.rel (0) target = $region29
    $region28: #{tpu_custom_call.1} parent=1 // pred_region
      _
    $region29: #{tpu_custom_call.1} parent=1 // pred_fallthru
      _
    %v27 = vld [vmem:[%s0] sm:$0x1f]
    %v28 = vld [vmem:[%s1] sm:$0xff]
    %v29 = vld [vmem:[%s1 + $0x8] sm:$0xff]
    %v30 = vld [vmem:[%s1 + $0x10] sm:$0xff]
    %v31 = vld [vmem:[%s1 + $0x18] sm:$0xff]
    %v32 = vld [vmem:[%s2] sm:$0xff]
    %v33 = vld [vmem:[%s2 + $0x8] sm:$0xff]
    %v34 = vld [vmem:[%s2 + $0x10] sm:$0xff]
    %v35 = vld [vmem:[%s2 + $0x18] sm:$0xff]
    %37 = vset.pattern.permute.xlu0 0
    %38 = vperm.xlu0 %37, %v32
    %v39 = vpop.permute.xlu0 %38
    %42 = vset.pattern.permute.xlu0 0
    %43 = vperm.xlu0 %42, %v33
    %v44 = vpop.permute.xlu0 %43
    %47 = vset.pattern.permute.xlu0 0
    %48 = vperm.xlu0 %47, %v34
    %v49 = vpop.permute.xlu0 %48
    %52 = vset.pattern.permute.xlu0 0
    %53 = vperm.xlu0 %52, %v35
    %v54 = vpop.permute.xlu0 %53
    %vm56 = vcmask 39936
    %v58 = vsel %vm56, %v28, 0
    %v61 = vsel %vm56, %v29, 0
    %v64 = vsel %vm56, %v30, 0
    %v67 = vsel %vm56, %v31, 0
    %vm69 = vcmask 1044480
    %v71 = vsel %vm69, %v27, 0
    %73 = vmatprep.subr.mxu0 0.0
    %74 = vmatpush1.msra.mxu0 0.0
    %75 = vmatprep.subr.mxu0 0.0
    %76 = vmatpush1.msra.mxu0 0.0
    %77 = vmatprep.subr.mxu0 0.0
    %78 = vmatpush1.msra.mxu0 0.0
    %79 = vmatprep.subr.mxu0 0.0
    %80 = vmatpush1.msra.mxu0 0.0
    %81 = vmatprep.subr.mxu0 0.0
    %82 = vmatpush1.msra.mxu0 0.0
    %83 = vmatprep.subr.mxu0 0.0
    %84 = vmatpush1.msra.mxu0 0.0
    %85 = vmatprep.subr.mxu0 0.0
    %86 = vmatpush1.msra.mxu0 0.0
    %87 = vmatprep.subr.mxu0 0.0
    %88 = vmatpush1.msra.mxu0 0.0
    %89 = vmatprep.subr.mxu0 0.0
    %90 = vmatpush1.msra.mxu0 0.0
    %91 = vmatprep.subr.mxu0 0.0
    %92 = vmatpush1.msra.mxu0 0.0
    %93 = vmatprep.subr.mxu0 0.0
    %94 = vmatpush1.msra.mxu0 0.0
    %95 = vmatprep.subr.mxu0 0.0
    %96 = vmatpush1.msra.mxu0 0.0
    %97 = vmatprep.subr.mxu0 0.0
    %98 = vmatpush1.msra.mxu0 0.0
    %99 = vmatprep.subr.mxu0 0.0
    %100 = vmatpush1.msra.mxu0 0.0
    %101 = vmatprep.subr.mxu0 0.0
    %102 = vmatpush1.msra.mxu0 0.0
    %103 = vmatprep.subr.mxu0 0.0
    %104 = vmatpush1.msra.mxu0 %v71
    %105 = vmatprep.subr.mxu0 0.0
    %106 = vmatpush2.msra.mxu0 0.0
    %107 = vmatprep.subr.mxu0 0.0
    %108 = vmatpush2.msra.mxu0 0.0
    %109 = vmatprep.subr.mxu0 0.0
    %110 = vmatpush2.msra.mxu0 0.0
    %111 = vmatprep.subr.mxu0 0.0
    %112 = vmatpush2.msra.mxu0 0.0
    %113 = vmatprep.subr.mxu0 0.0
    %114 = vmatpush2.msra.mxu0 0.0
    %115 = vmatprep.subr.mxu0 0.0
    %116 = vmatpush2.msra.mxu0 0.0
    %117 = vmatprep.subr.mxu0 0.0
    %118 = vmatpush2.msra.mxu0 0.0
    %119 = vmatprep.subr.mxu0 0.0
    %120 = vmatpush2.msra.mxu0 0.0
    %121 = vmatprep.subr.mxu0 0.0
    %122 = vmatpush2.msra.mxu0 0.0
    %123 = vmatprep.subr.mxu0 0.0
    %124 = vmatpush2.msra.mxu0 0.0
    %125 = vmatprep.subr.mxu0 0.0
    %126 = vmatpush2.msra.mxu0 0.0
    %127 = vmatprep.subr.mxu0 0.0
    %128 = vmatpush2.msra.mxu0 0.0
    %129 = vmatprep.subr.mxu0 0.0
    %130 = vmatpush2.msra.mxu0 0.0
    %131 = vmatprep.subr.mxu0 0.0
    %132 = vmatpush2.msra.mxu0 0.0
    %133 = vmatprep.subr.mxu0 0.0
    %134 = vmatpush2.msra.mxu0 0.0
    %135 = vmatprep.subr.mxu0 0.0
    %136 = vmatpush2.msra.mxu0 0.0
    %137 = vmatprep.mubr.f32.mxu0 0.0
    %138 = vmatmul.mubr.f32.gmra.mxu0 %v58
    %v139 = vpop.f32.mrf.mxu0
    %v140 = vadd.f32 %v39, %v139
    %v141 = vpop.f32.mrf.mxu0
    %142 = vmatprep.mubr.f32.mxu0 0.0
    %143 = vmatmul.mubr.f32.gmra.mxu0 %v61
    %v144 = vpop.f32.mrf.mxu0
    %v145 = vadd.f32 %v44, %v144
    %v146 = vpop.f32.mrf.mxu0
    %147 = vmatprep.mubr.f32.mxu0 0.0
    %148 = vmatmul.mubr.f32.gmra.mxu0 %v64
    %v149 = vpop.f32.mrf.mxu0
    %v150 = vadd.f32 %v49, %v149
    %v151 = vpop.f32.mrf.mxu0
    %152 = vmatprep.mubr.f32.mxu0 0.0
    %153 = vmatmul.mubr.f32.gmra.mxu0 %v67
    %v154 = vpop.f32.mrf.mxu0
    %v155 = vadd.f32 %v54, %v154
    %v156 = vpop.f32.mrf.mxu0
    %157 = vdwg.mxu0
    %vm158 = vcmp.gt.f32.partialorder %v140, 0.0
    %vm159 = vcmp.gt.f32.partialorder %v145, 0.0
    %vm160 = vcmp.gt.f32.partialorder %v150, 0.0
    %vm161 = vcmp.gt.f32.partialorder %v155, 0.0
    %v162 = vmul.f32 %v140, 0.01
    %v163 = vmul.f32 %v145, 0.01
    %v164 = vmul.f32 %v150, 0.01
    %v165 = vmul.f32 %v155, 0.01
    %v166 = vsel %vm158, %v140, %v162
    %v167 = vsel %vm159, %v145, %v163
    %v168 = vsel %vm160, %v150, %v164
    %v169 = vsel %vm161, %v155, %v165
    %v170 = vld [vmem:[%s3] sm:$0xff]
    %v171 = vld [vmem:[%s3 + $0x8] sm:$0xff]
    %v172 = vld [vmem:[%s3 + $0x10] sm:$0xff]
    %v173 = vld [vmem:[%s3 + $0x18] sm:$0xff]
    %v174 = vld [vmem:[%s4] sm:$0xff]
    %v175 = vld [vmem:[%s4 + $0x8] sm:$0xff]
    %v176 = vld [vmem:[%s4 + $0x10] sm:$0xff]
    %v177 = vld [vmem:[%s4 + $0x18] sm:$0xff]
    %179 = vset.pattern.permute.xlu0 0
    %180 = vperm.xlu0 %179, %v174
    %v181 = vpop.permute.xlu0 %180
    %184 = vset.pattern.permute.xlu0 0
    %185 = vperm.xlu0 %184, %v175
    %v186 = vpop.permute.xlu0 %185
    %189 = vset.pattern.permute.xlu0 0
    %190 = vperm.xlu0 %189, %v176
    %v191 = vpop.permute.xlu0 %190
    %194 = vset.pattern.permute.xlu0 0
    %195 = vperm.xlu0 %194, %v177
    %v196 = vpop.permute.xlu0 %195
    %vm198 = vcmask 261120
    %v200 = vsel %vm198, %v170, 0
    %v203 = vsel %vm198, %v171, 0
    %v206 = vsel %vm198, %v172, 0
    %v209 = vsel %vm198, %v173, 0
    %211 = vmatprep.subr.mxu0 0.0
    %212 = vmatpush1.msra.mxu0 0.0
    %213 = vmatprep.subr.mxu0 0.0
    %214 = vmatpush1.msra.mxu0 0.0
    %215 = vmatprep.subr.mxu0 0.0
    %216 = vmatpush1.msra.mxu0 0.0
    %217 = vmatprep.subr.mxu0 0.0
    %218 = vmatpush1.msra.mxu0 0.0
    %219 = vmatprep.subr.mxu0 0.0
    %220 = vmatpush1.msra.mxu0 0.0
    %221 = vmatprep.subr.mxu0 0.0
    %222 = vmatpush1.msra.mxu0 0.0
    %223 = vmatprep.subr.mxu0 0.0
    %224 = vmatpush1.msra.mxu0 0.0
    %225 = vmatprep.subr.mxu0 0.0
    %226 = vmatpush1.msra.mxu0 0.0
    %227 = vmatprep.subr.mxu0 0.0
    %228 = vmatpush1.msra.mxu0 0.0
    %229 = vmatprep.subr.mxu0 0.0
    %230 = vmatpush1.msra.mxu0 0.0
    %231 = vmatprep.subr.mxu0 0.0
    %232 = vmatpush1.msra.mxu0 0.0
    %233 = vmatprep.subr.mxu0 0.0
    %234 = vmatpush1.msra.mxu0 0.0
    %235 = vmatprep.subr.mxu0 0.0
    %236 = vmatpush1.msra.mxu0 %v169
    %237 = vmatprep.subr.mxu0 0.0
    %238 = vmatpush1.msra.mxu0 %v168
    %239 = vmatprep.subr.mxu0 0.0
    %240 = vmatpush1.msra.mxu0 %v167
    %241 = vmatprep.subr.mxu0 0.0
    %242 = vmatpush1.msra.mxu0 %v166
    %243 = vmatprep.subr.mxu0 0.0
    %244 = vmatpush2.msra.mxu0 0.0
    %245 = vmatprep.subr.mxu0 0.0
    %246 = vmatpush2.msra.mxu0 0.0
    %247 = vmatprep.subr.mxu0 0.0
    %248 = vmatpush2.msra.mxu0 0.0
    %249 = vmatprep.subr.mxu0 0.0
    %250 = vmatpush2.msra.mxu0 0.0
    %251 = vmatprep.subr.mxu0 0.0
    %252 = vmatpush2.msra.mxu0 0.0
    %253 = vmatprep.subr.mxu0 0.0
    %254 = vmatpush2.msra.mxu0 0.0
    %255 = vmatprep.subr.mxu0 0.0
    %256 = vmatpush2.msra.mxu0 0.0
    %257 = vmatprep.subr.mxu0 0.0
    %258 = vmatpush2.msra.mxu0 0.0
    %259 = vmatprep.subr.mxu0 0.0
    %260 = vmatpush2.msra.mxu0 0.0
    %261 = vmatprep.subr.mxu0 0.0
    %262 = vmatpush2.msra.mxu0 0.0
    %263 = vmatprep.subr.mxu0 0.0
    %264 = vmatpush2.msra.mxu0 0.0
    %265 = vmatprep.subr.mxu0 0.0
    %266 = vmatpush2.msra.mxu0 0.0
    %267 = vmatprep.subr.mxu0 0.0
    %268 = vmatpush2.msra.mxu0 0.0
    %269 = vmatprep.subr.mxu0 0.0
    %270 = vmatpush2.msra.mxu0 0.0
    %271 = vmatprep.subr.mxu0 0.0
    %272 = vmatpush2.msra.mxu0 0.0
    %273 = vmatprep.subr.mxu0 0.0
    %274 = vmatpush2.msra.mxu0 0.0
    %275 = vmatprep.mubr.f32.mxu0 0.0
    %276 = vmatmul.mubr.f32.gmra.mxu0 %v200
    %v277 = vpop.f32.mrf.mxu0
    %v278 = vadd.f32 %v181, %v277
    %v279 = vpop.f32.mrf.mxu0
    %280 = vmatprep.mubr.f32.mxu0 0.0
    %281 = vmatmul.mubr.f32.gmra.mxu0 %v203
    %v282 = vpop.f32.mrf.mxu0
    %v283 = vadd.f32 %v186, %v282
    %v284 = vpop.f32.mrf.mxu0
    %285 = vmatprep.mubr.f32.mxu0 0.0
    %286 = vmatmul.mubr.f32.gmra.mxu0 %v206
    %v287 = vpop.f32.mrf.mxu0
    %v288 = vadd.f32 %v191, %v287
    %v289 = vpop.f32.mrf.mxu0
    %290 = vmatprep.mubr.f32.mxu0 0.0
    %291 = vmatmul.mubr.f32.gmra.mxu0 %v209
    %v292 = vpop.f32.mrf.mxu0
    %v293 = vadd.f32 %v196, %v292
    %v294 = vpop.f32.mrf.mxu0
    %295 = vdwg.mxu0
    %vm296 = vcmp.gt.f32.partialorder %v278, 0.0
    %vm297 = vcmp.gt.f32.partialorder %v283, 0.0
    %vm298 = vcmp.gt.f32.partialorder %v288, 0.0
    %vm299 = vcmp.gt.f32.partialorder %v293, 0.0
    %v300 = vmul.f32 %v278, 0.01
    %v301 = vmul.f32 %v283, 0.01
    %v302 = vmul.f32 %v288, 0.01
    %v303 = vmul.f32 %v293, 0.01
    %v304 = vsel %vm296, %v278, %v300
    %v305 = vsel %vm297, %v283, %v301
    %v306 = vsel %vm298, %v288, %v302
    %v307 = vsel %vm299, %v293, %v303
    %v308 = vld [vmem:[%s5] sm:$0x3]
    %v309 = vld [vmem:[%s6] sm:$0x3]
    %311 = vset.pattern.permute.xlu0 0
    %312 = vperm.xlu0 %311, %v309
    %v313 = vpop.permute.xlu0 %312
    %v316 = vsel %vm198, %v308, 0
    %318 = vmatprep.subr.mxu0 0.0
    %319 = vmatpush1.msra.mxu0 0.0
    %320 = vmatprep.subr.mxu0 0.0
    %321 = vmatpush1.msra.mxu0 0.0
    %322 = vmatprep.subr.mxu0 0.0
    %323 = vmatpush1.msra.mxu0 0.0
    %324 = vmatprep.subr.mxu0 0.0
    %325 = vmatpush1.msra.mxu0 0.0
    %326 = vmatprep.subr.mxu0 0.0
    %327 = vmatpush1.msra.mxu0 0.0
    %328 = vmatprep.subr.mxu0 0.0
    %329 = vmatpush1.msra.mxu0 0.0
    %330 = vmatprep.subr.mxu0 0.0
    %331 = vmatpush1.msra.mxu0 0.0
    %332 = vmatprep.subr.mxu0 0.0
    %333 = vmatpush1.msra.mxu0 0.0
    %334 = vmatprep.subr.mxu0 0.0
    %335 = vmatpush1.msra.mxu0 0.0
    %336 = vmatprep.subr.mxu0 0.0
    %337 = vmatpush1.msra.mxu0 0.0
    %338 = vmatprep.subr.mxu0 0.0
    %339 = vmatpush1.msra.mxu0 0.0
    %340 = vmatprep.subr.mxu0 0.0
    %341 = vmatpush1.msra.mxu0 0.0
    %342 = vmatprep.subr.mxu0 0.0
    %343 = vmatpush1.msra.mxu0 %v307
    %344 = vmatprep.subr.mxu0 0.0
    %345 = vmatpush1.msra.mxu0 %v306
    %346 = vmatprep.subr.mxu0 0.0
    %347 = vmatpush1.msra.mxu0 %v305
    %348 = vmatprep.subr.mxu0 0.0
    %349 = vmatpush1.msra.mxu0 %v304
    %350 = vmatprep.subr.mxu0 0.0
    %351 = vmatpush2.msra.mxu0 0.0
    %352 = vmatprep.subr.mxu0 0.0
    %353 = vmatpush2.msra.mxu0 0.0
    %354 = vmatprep.subr.mxu0 0.0
    %355 = vmatpush2.msra.mxu0 0.0
    %356 = vmatprep.subr.mxu0 0.0
    %357 = vmatpush2.msra.mxu0 0.0
    %358 = vmatprep.subr.mxu0 0.0
    %359 = vmatpush2.msra.mxu0 0.0
    %360 = vmatprep.subr.mxu0 0.0
    %361 = vmatpush2.msra.mxu0 0.0
    %362 = vmatprep.subr.mxu0 0.0
    %363 = vmatpush2.msra.mxu0 0.0
    %364 = vmatprep.subr.mxu0 0.0
    %365 = vmatpush2.msra.mxu0 0.0
    %366 = vmatprep.subr.mxu0 0.0
    %367 = vmatpush2.msra.mxu0 0.0
    %368 = vmatprep.subr.mxu0 0.0
    %369 = vmatpush2.msra.mxu0 0.0
    %370 = vmatprep.subr.mxu0 0.0
    %371 = vmatpush2.msra.mxu0 0.0
    %372 = vmatprep.subr.mxu0 0.0
    %373 = vmatpush2.msra.mxu0 0.0
    %374 = vmatprep.subr.mxu0 0.0
    %375 = vmatpush2.msra.mxu0 0.0
    %376 = vmatprep.subr.mxu0 0.0
    %377 = vmatpush2.msra.mxu0 0.0
    %378 = vmatprep.subr.mxu0 0.0
    %379 = vmatpush2.msra.mxu0 0.0
    %380 = vmatprep.subr.mxu0 0.0
    %381 = vmatpush2.msra.mxu0 0.0
    %382 = vmatprep.mubr.f32.mxu0 0.0
    %383 = vmatmul.mubr.f32.gmra.mxu0 %v316
    %v384 = vpop.f32.mrf.mxu0
    %v385 = vadd.f32 %v313, %v384
    %v386 = vpop.f32.mrf.mxu0
    %387 = vdwg.mxu0
    %vm388 = vcmp.gt.f32.partialorder %v385, 0.0
    %v389 = vmul.f32 %v385, 0.01
    %v390 = vsel %vm388, %v385, %v389
    %391 = vst [vmem:[#allocation2] sm:$0x3] %v390
    // Predicated region
    $region30: #{tpu_custom_call.1} parent=1 // pred_check
      _
    $region31: #{tpu_custom_call.1} parent=1 // pred_check_branch
      %393 = sbr.rel (0) target = $region33
    $region32: #{tpu_custom_call.1} parent=1 // pred_region
      %s395 = ssub.s32 32, 32
      %396 = vsyncadd [#allocation3], %s395
      %s398 = sshll.u32 [#allocation2], 4
      %s399 = int_to_ptr.vmem [resolvable:$true] %s398
      %401 = dma.vmem_to_hbm [thread:$0]  %s399, 32, %s7, [#allocation3]
    $region33: #{tpu_custom_call.1} parent=1 // pred_fallthru
      _
    // Predicated region
    $region34: #{tpu_custom_call.1} parent=1 // pred_check
      _
    $region35: #{tpu_custom_call.1} parent=1 // pred_check_branch
      %403 = sbr.rel (0) target = $region37
    $region36: #{tpu_custom_call.1} parent=1 // pred_region
      %404 = dma.done [#allocation3], 32
    $region37: #{tpu_custom_call.1} parent=1 // pred_fallthru
      _
    %405 = vsyncpa [#allocation3], 1

</llo_original>
